<compile_context>
chip_gen: v6e
topology: v6e:2x2x1
jax: 0.10.0
libtpu: 0.0.40
codegen_flags: <defaults>
</compile_context>

<pallas_src>
import jax
import jax.numpy as jnp
from jax.experimental import pallas as pl
from jax.experimental.pallas import tpu as pltpu

# ---------------- config (small, deterministic) ----------------
B = 2          # batch
L_ENC = 16     # encoder sequence length
L_DEC = 12     # decoder sequence length (label_len + pred_len)
P = 8          # prediction length (output time steps)
C = 8          # number of input features
INPUT_FEATURES = [f"f{i}" for i in range(C)]
TARGET_FEATURES = ["f1", "f3", "f6"]
TARGET_INDICES = tuple(INPUT_FEATURES.index(f) for f in TARGET_FEATURES)  # (1, 3, 6)
T = len(TARGET_INDICES)


def _target_selector_kernel(xe_ref, xd_ref, wte_ref, wtd_ref, wf_ref, b_ref, out_ref):
    """Single invocation (grid=()), whole problem resident in VMEM.

    xe_ref : [B, L_ENC, C]  encoder input, native layout (no host plumbing)
    xd_ref : [B, L_DEC, C]  decoder input, native layout
    wte_ref: [P, L_ENC]     encoder time-projection weights
    wtd_ref: [P, L_DEC]     decoder time-projection weights
    wf_ref : [C, T]         feature-mix weights, target columns only (folded at init)
    b_ref  : [1, T]         selected bias (folded at init)
    out_ref: [B, P, T]      selected model output, written directly
    """
    # Static Python loop over the tiny batch: fully unrolled, B dense dots,
    # no block-diagonal zero padding, no in-kernel gather/concat.
    for b in range(B):
        h = (jnp.dot(wte_ref[...], xe_ref[b], preferred_element_type=jnp.float32)
             + jnp.dot(wtd_ref[...], xd_ref[b], preferred_element_type=jnp.float32))  # [P, C]
        out = jnp.dot(h, wf_ref[...], preferred_element_type=jnp.float32) + b_ref[...]  # [P, T]
        out_ref[b] = out.astype(out_ref.dtype)


def init_target_selector(wt_enc, wt_dec, wf, bias):
    """One-time parameter folding (hoisted out of the per-forward hot path).

    Mirrors TargetSelector.__init__: resolve target_indices and pre-select the
    target columns of the feature-mixing weights / bias.
    """
    idx = list(TARGET_INDICES)
    return {
        "wt_enc": wt_enc,            # [P, L_ENC]
        "wt_dec": wt_dec,            # [P, L_DEC]
        "wf_sel": wf[:, idx],        # [C, T]   selection folded into the weight
        "bias_sel": bias[:, idx],    # [1, T]   selection folded into the bias
    }


_COST = pl.CostEstimate(
    flops=B * (2 * P * L_ENC * C + 2 * P * L_DEC * C + 2 * P * C * T + P * T),
    transcendentals=0,
    bytes_accessed=4 * (B * L_ENC * C + B * L_DEC * C + P * L_ENC + P * L_DEC
                        + C * T + T + B * P * T),
)


def target_selector_forward(params, x_enc, x_mark_enc, x_dec, x_mark_dec, mask=None):
    """Forward hot path: exactly one pallas_call, no surrounding XLA layout ops.

    x_mark_enc / x_mark_dec / mask accepted for signature parity with
    TargetSelector.forward but unused by the synthetic inner model."""
    del x_mark_enc, x_mark_dec, mask
    vmem = pl.BlockSpec(memory_space=pltpu.MemorySpace.VMEM)
    return pl.pallas_call(
        _target_selector_kernel,
        out_shape=jax.ShapeDtypeStruct((B, P, T), jnp.float32),
        in_specs=[vmem] * 6,
        out_specs=vmem,
        cost_estimate=_COST,
    )(x_enc, x_dec, params["wt_enc"], params["wt_dec"],
      params["wf_sel"], params["bias_sel"])


def _reference(x_enc, x_dec, wt_enc, wt_dec, wf, bias):
    full = (jnp.einsum("pl,blc->bpc", wt_enc, x_enc)
            + jnp.einsum("pl,blc->bpc", wt_dec, x_dec))
    full = jnp.einsum("bpc,cd->bpd", full, wf) + bias[None, :, :]
    return full[:, :, list(TARGET_INDICES)]


if __name__ == "__main__":
    key = jax.random.PRNGKey(0)
    k1, k2, k3, k4, k5, k6, k7, k8 = jax.random.split(key, 8)

    # Inputs (x_mark_* use 4 time-mark channels, as in Informer-style loaders).
    x_enc = jax.random.normal(k1, (B, L_ENC, C), dtype=jnp.float32)
    x_mark_enc = jax.random.normal(k2, (B, L_ENC, 4), dtype=jnp.float32)
    x_dec = jax.random.normal(k3, (B, L_DEC, C), dtype=jnp.float32)
    x_mark_dec = jax.random.normal(k4, (B, L_DEC, 4), dtype=jnp.float32)

    # Deterministic synthetic inner-model parameters.
    wt_enc = jax.random.normal(k5, (P, L_ENC), dtype=jnp.float32) * 0.1
    wt_dec = jax.random.normal(k6, (P, L_DEC), dtype=jnp.float32) * 0.1
    wf = jax.random.normal(k7, (C, C), dtype=jnp.float32) * 0.1
    bias = jax.random.normal(k8, (1, C), dtype=jnp.float32) * 0.01

    # One-time init (parameter folding hoisted out of the forward path).
    params = init_target_selector(wt_enc, wt_dec, wf, bias)

    out = target_selector_forward(params, x_enc, x_mark_enc, x_dec, x_mark_dec)
    out = jax.block_until_ready(out)

    ref = _reference(x_enc, x_dec, wt_enc, wt_dec, wf, bias)
    assert out.shape == (B, P, T), out.shape
    assert jnp.allclose(out, ref, atol=1e-4, rtol=1e-4), "mismatch vs reference"

    print("KERNEL_OK")
</pallas_src>

<mosaic_0001>
module attributes {stable_mosaic.version = 11 : i64} {
  func.func @_target_selector_kernel(%arg0: memref<2x16x8xf32, #tpu.memory_space<vmem>>, %arg1: memref<2x12x8xf32, #tpu.memory_space<vmem>>, %arg2: memref<8x16xf32, #tpu.memory_space<vmem>>, %arg3: memref<8x12xf32, #tpu.memory_space<vmem>>, %arg4: memref<8x3xf32, #tpu.memory_space<vmem>>, %arg5: memref<1x3xf32, #tpu.memory_space<vmem>>, %arg6: memref<2x8x3xf32, #tpu.memory_space<vmem>>) attributes {dimension_semantics = [], scalar_prefetch = 0 : i64, scratch_operands = 0 : i64, tpu.core_type = #tpu.core_type<tc>} {
    %c0 = arith.constant 0 : index
    %c0_0 = arith.constant 0 : index
    %0 = vector.load %arg2[%c0, %c0_0] : memref<8x16xf32, #tpu.memory_space<vmem>>, vector<8x16xf32>
    %c0_1 = arith.constant 0 : index
    %c0_2 = arith.constant 0 : index
    %c0_3 = arith.constant 0 : index
    %1 = vector.load %arg0[%c0_1, %c0_2, %c0_3] : memref<2x16x8xf32, #tpu.memory_space<vmem>>, vector<1x16x8xf32>
    %2 = vector.shape_cast %1 : vector<1x16x8xf32> to vector<16x8xf32>
    %cst = arith.constant dense<0.000000e+00> : vector<8x8xf32>
    %3 = tpu.matmul %0, %2, %cst {dimension_numbers = #tpu.dot_dimension_numbers<[1], [0], [0], [1], [0, 0, 1, 1], [], []>} : vector<8x16xf32>, vector<16x8xf32>, vector<8x8xf32> -> vector<8x8xf32>
    %c0_4 = arith.constant 0 : index
    %c0_5 = arith.constant 0 : index
    %4 = vector.load %arg3[%c0_4, %c0_5] : memref<8x12xf32, #tpu.memory_space<vmem>>, vector<8x12xf32>
    %c0_6 = arith.constant 0 : index
    %c0_7 = arith.constant 0 : index
    %c0_8 = arith.constant 0 : index
    %5 = vector.load %arg1[%c0_6, %c0_7, %c0_8] : memref<2x12x8xf32, #tpu.memory_space<vmem>>, vector<1x12x8xf32>
    %6 = vector.shape_cast %5 : vector<1x12x8xf32> to vector<12x8xf32>
    %cst_9 = arith.constant dense<0.000000e+00> : vector<8x8xf32>
    %7 = tpu.matmul %4, %6, %cst_9 {dimension_numbers = #tpu.dot_dimension_numbers<[1], [0], [0], [1], [0, 0, 1, 1], [], []>} : vector<8x12xf32>, vector<12x8xf32>, vector<8x8xf32> -> vector<8x8xf32>
    %8 = arith.addf %3, %7 : vector<8x8xf32>
    %c0_10 = arith.constant 0 : index
    %c0_11 = arith.constant 0 : index
    %9 = vector.load %arg4[%c0_10, %c0_11] : memref<8x3xf32, #tpu.memory_space<vmem>>, vector<8x3xf32>
    %cst_12 = arith.constant dense<0.000000e+00> : vector<8x3xf32>
    %10 = tpu.matmul %8, %9, %cst_12 {dimension_numbers = #tpu.dot_dimension_numbers<[1], [0], [0], [1], [0, 0, 1, 1], [], []>} : vector<8x8xf32>, vector<8x3xf32>, vector<8x3xf32> -> vector<8x3xf32>
    %c0_13 = arith.constant 0 : index
    %c0_14 = arith.constant 0 : index
    %11 = vector.load %arg5[%c0_13, %c0_14] : memref<1x3xf32, #tpu.memory_space<vmem>>, vector<1x3xf32>
    %12 = vector.broadcast %11 : vector<1x3xf32> to vector<8x3xf32>
    %13 = arith.addf %10, %12 : vector<8x3xf32>
    %c0_15 = arith.constant 0 : index
    %c0_16 = arith.constant 0 : index
    %c0_17 = arith.constant 0 : index
    %14 = vector.load %arg6[%c0_15, %c0_16, %c0_17] : memref<2x8x3xf32, #tpu.memory_space<vmem>>, vector<1x8x3xf32>
    %15 = vector.shape_cast %14 : vector<1x8x3xf32> to vector<8x3xf32>
    %16 = vector.shape_cast %13 : vector<8x3xf32> to vector<1x8x3xf32>
    tpu.vector_store %arg6[%c0_15, %c0_16, %c0_17], %16 {strides = array<i32>} : memref<2x8x3xf32, #tpu.memory_space<vmem>>, vector<1x8x3xf32>,
    %c0_18 = arith.constant 0 : index
    %c0_19 = arith.constant 0 : index
    %17 = vector.load %arg2[%c0_18, %c0_19] : memref<8x16xf32, #tpu.memory_space<vmem>>, vector<8x16xf32>
    %c1 = arith.constant 1 : index
    %c0_20 = arith.constant 0 : index
    %c0_21 = arith.constant 0 : index
    %18 = vector.load %arg0[%c1, %c0_20, %c0_21] : memref<2x16x8xf32, #tpu.memory_space<vmem>>, vector<1x16x8xf32>
    %19 = vector.shape_cast %18 : vector<1x16x8xf32> to vector<16x8xf32>
    %cst_22 = arith.constant dense<0.000000e+00> : vector<8x8xf32>
    %20 = tpu.matmul %17, %19, %cst_22 {dimension_numbers = #tpu.dot_dimension_numbers<[1], [0], [0], [1], [0, 0, 1, 1], [], []>} : vector<8x16xf32>, vector<16x8xf32>, vector<8x8xf32> -> vector<8x8xf32>
    %c0_23 = arith.constant 0 : index
    %c0_24 = arith.constant 0 : index
    %21 = vector.load %arg3[%c0_23, %c0_24] : memref<8x12xf32, #tpu.memory_space<vmem>>, vector<8x12xf32>
    %c1_25 = arith.constant 1 : index
    %c0_26 = arith.constant 0 : index
    %c0_27 = arith.constant 0 : index
    %22 = vector.load %arg1[%c1_25, %c0_26, %c0_27] : memref<2x12x8xf32, #tpu.memory_space<vmem>>, vector<1x12x8xf32>
    %23 = vector.shape_cast %22 : vector<1x12x8xf32> to vector<12x8xf32>
    %cst_28 = arith.constant dense<0.000000e+00> : vector<8x8xf32>
    %24 = tpu.matmul %21, %23, %cst_28 {dimension_numbers = #tpu.dot_dimension_numbers<[1], [0], [0], [1], [0, 0, 1, 1], [], []>} : vector<8x12xf32>, vector<12x8xf32>, vector<8x8xf32> -> vector<8x8xf32>
    %25 = arith.addf %20, %24 : vector<8x8xf32>
    %c0_29 = arith.constant 0 : index
    %c0_30 = arith.constant 0 : index
    %26 = vector.load %arg4[%c0_29, %c0_30] : memref<8x3xf32, #tpu.memory_space<vmem>>, vector<8x3xf32>
    %cst_31 = arith.constant dense<0.000000e+00> : vector<8x3xf32>
    %27 = tpu.matmul %25, %26, %cst_31 {dimension_numbers = #tpu.dot_dimension_numbers<[1], [0], [0], [1], [0, 0, 1, 1], [], []>} : vector<8x8xf32>, vector<8x3xf32>, vector<8x3xf32> -> vector<8x3xf32>
    %c0_32 = arith.constant 0 : index
    %c0_33 = arith.constant 0 : index
    %28 = vector.load %arg5[%c0_32, %c0_33] : memref<1x3xf32, #tpu.memory_space<vmem>>, vector<1x3xf32>
    %29 = vector.broadcast %28 : vector<1x3xf32> to vector<8x3xf32>
    %30 = arith.addf %27, %29 : vector<8x3xf32>
    %c1_34 = arith.constant 1 : index
    %c0_35 = arith.constant 0 : index
    %c0_36 = arith.constant 0 : index
    %31 = vector.load %arg6[%c1_34, %c0_35, %c0_36] : memref<2x8x3xf32, #tpu.memory_space<vmem>>, vector<1x8x3xf32>
    %32 = vector.shape_cast %31 : vector<1x8x3xf32> to vector<8x3xf32>
    %33 = vector.shape_cast %30 : vector<8x3xf32> to vector<1x8x3xf32>
    tpu.vector_store %arg6[%c1_34, %c0_35, %c0_36], %33 {strides = array<i32>} : memref<2x8x3xf32, #tpu.memory_space<vmem>>, vector<1x8x3xf32>,
    return
  }
}

</mosaic_0001>

<llo_original>
// kernel: tpu_custom_call.1
$region0: #{tpu_custom_call.1}
  #allocation0 [shape = 'u32[]', space=smem, size = 0x4, offset = 0x4, fixed_abs, tag = 'smem constant byte address 0x4 - core index']
  #allocation1 [shape = 'u32[144,128]{1,0:T(1,128)}', space=vmem, size = 0x12000, scoped, tag = 'internal scratch']
  %s0 = inlined_call_operand.vmem [shape: f32[2,16,8], index: 0, kind: input, shape index: {}]
  %s1 = inlined_call_operand.vmem [shape: f32[2,12,8], index: 1, kind: input, shape index: {}]
  %s2 = inlined_call_operand.vmem [shape: f32[8,16], index: 2, kind: input, shape index: {}]
  %s3 = inlined_call_operand.vmem [shape: f32[8,12], index: 3, kind: input, shape index: {}]
  %s4 = inlined_call_operand.vmem [shape: f32[8,3], index: 4, kind: input, shape index: {}]
  %s5 = inlined_call_operand.vmem [shape: f32[1,3], index: 5, kind: input, shape index: {}]
  %s6 = inlined_call_operand.vmem [shape: f32[2,8,3], index: 6, kind: output, shape index: {}]
  %s7 = sld [smem:[#allocation0]]
  $region34: #{tpu_custom_call.1} parent=0
    _
  %s9 = ssub.s32 1, %s7
  %s10 = scalar_select 0, %s9, %s7
  // Predicated region
  $region2: #{tpu_custom_call.1} parent=0 // pred_check
    _
  $region3: #{tpu_custom_call.1} parent=0 // pred_check_branch
    %12 = sbr.rel (0) target = $region5
  $region4: #{tpu_custom_call.1} parent=0 // pred_region
    _
  $region5: #{tpu_custom_call.1} parent=0 // pred_fallthru
    _
  // Predicated region
  $region6: #{tpu_custom_call.1} parent=0 // pred_check
    _
  $region7: #{tpu_custom_call.1} parent=0 // pred_check_branch
    %14 = sbr.rel (0) target = $region9
  $region8: #{tpu_custom_call.1} parent=0 // pred_region
    _
  $region9: #{tpu_custom_call.1} parent=0 // pred_fallthru
    _
  // Predicated region
  $region10: #{tpu_custom_call.1} parent=0 // pred_check
    _
  $region11: #{tpu_custom_call.1} parent=0 // pred_check_branch
    %16 = sbr.rel (0) target = $region13
  $region12: #{tpu_custom_call.1} parent=0 // pred_region
    _
  $region13: #{tpu_custom_call.1} parent=0 // pred_fallthru
    _
  // Predicated region
  $region14: #{tpu_custom_call.1} parent=0 // pred_check
    _
  $region15: #{tpu_custom_call.1} parent=0 // pred_check_branch
    %18 = sbr.rel (0) target = $region17
  $region16: #{tpu_custom_call.1} parent=0 // pred_region
    _
  $region17: #{tpu_custom_call.1} parent=0 // pred_fallthru
    _
  // Predicated region
  $region18: #{tpu_custom_call.1} parent=0 // pred_check
    _
  $region19: #{tpu_custom_call.1} parent=0 // pred_check_branch
    %20 = sbr.rel (0) target = $region21
  $region20: #{tpu_custom_call.1} parent=0 // pred_region
    _
  $region21: #{tpu_custom_call.1} parent=0 // pred_fallthru
    _
  // Predicated region
  $region22: #{tpu_custom_call.1} parent=0 // pred_check
    _
  $region23: #{tpu_custom_call.1} parent=0 // pred_check_branch
    %22 = sbr.rel (0) target = $region25
  $region24: #{tpu_custom_call.1} parent=0 // pred_region
    _
  $region25: #{tpu_custom_call.1} parent=0 // pred_fallthru
    _
  %v23 = vld [vmem:[%s2] sm:$0xff]
  %v24 = vld [vmem:[%s0] sm:$0xff]
  %v25 = vld [vmem:[%s0 + $0x8] sm:$0xff]
  %v26 = vld [vmem:[%s3] sm:$0xff]
  %v27 = vld [vmem:[%s1] sm:$0xff]
  %v28 = vld [vmem:[%s1 + $0x8] sm:$0xf]
  %vm29 = vcmask 97280
  %v31 = vsel %vm29, %v26, 0
  %vm33 = vcmask 1043456
  %v35 = vsel %vm33, %v28, 0
  %37 = vmatprep.subr.mxu0 0.0
  %38 = vmatpush1.msra.mxu0 0.0
  %39 = vmatprep.subr.mxu0 0.0
  %40 = vmatpush1.msra.mxu0 0.0
  %41 = vmatprep.subr.mxu0 0.0
  %42 = vmatpush1.msra.mxu0 0.0
  %43 = vmatprep.subr.mxu0 0.0
  %44 = vmatpush1.msra.mxu0 0.0
  %45 = vmatprep.subr.mxu0 0.0
  %46 = vmatpush1.msra.mxu0 0.0
  %47 = vmatprep.subr.mxu0 0.0
  %48 = vmatpush1.msra.mxu0 0.0
  %49 = vmatprep.subr.mxu0 0.0
  %50 = vmatpush1.msra.mxu0 0.0
  %51 = vmatprep.subr.mxu0 0.0
  %52 = vmatpush1.msra.mxu0 0.0
  %53 = vmatprep.subr.mxu0 0.0
  %54 = vmatpush1.msra.mxu0 0.0
  %55 = vmatprep.subr.mxu0 0.0
  %56 = vmatpush1.msra.mxu0 0.0
  %57 = vmatprep.subr.mxu0 0.0
  %58 = vmatpush1.msra.mxu0 0.0
  %59 = vmatprep.subr.mxu0 0.0
  %60 = vmatpush1.msra.mxu0 0.0
  %61 = vmatprep.subr.mxu0 0.0
  %62 = vmatpush1.msra.mxu0 0.0
  %63 = vmatprep.subr.mxu0 0.0
  %64 = vmatpush1.msra.mxu0 0.0
  %65 = vmatprep.subr.mxu0 0.0
  %66 = vmatpush1.msra.mxu0 %v35
  %67 = vmatprep.subr.mxu0 0.0
  %68 = vmatpush1.msra.mxu0 %v27
  %69 = vmatprep.subr.mxu0 0.0
  %70 = vmatpush2.msra.mxu0 0.0
  %71 = vmatprep.subr.mxu0 0.0
  %72 = vmatpush2.msra.mxu0 0.0
  %73 = vmatprep.subr.mxu0 0.0
  %74 = vmatpush2.msra.mxu0 0.0
  %75 = vmatprep.subr.mxu0 0.0
  %76 = vmatpush2.msra.mxu0 0.0
  %77 = vmatprep.subr.mxu0 0.0
  %78 = vmatpush2.msra.mxu0 0.0
  %79 = vmatprep.subr.mxu0 0.0
  %80 = vmatpush2.msra.mxu0 0.0
  %81 = vmatprep.subr.mxu0 0.0
  %82 = vmatpush2.msra.mxu0 0.0
  %83 = vmatprep.subr.mxu0 0.0
  %84 = vmatpush2.msra.mxu0 0.0
  %85 = vmatprep.subr.mxu0 0.0
  %86 = vmatpush2.msra.mxu0 0.0
  %87 = vmatprep.subr.mxu0 0.0
  %88 = vmatpush2.msra.mxu0 0.0
  %89 = vmatprep.subr.mxu0 0.0
  %90 = vmatpush2.msra.mxu0 0.0
  %91 = vmatprep.subr.mxu0 0.0
  %92 = vmatpush2.msra.mxu0 0.0
  %93 = vmatprep.subr.mxu0 0.0
  %94 = vmatpush2.msra.mxu0 0.0
  %95 = vmatprep.subr.mxu0 0.0
  %96 = vmatpush2.msra.mxu0 0.0
  %97 = vmatprep.subr.mxu0 0.0
  %98 = vmatpush2.msra.mxu0 0.0
  %99 = vmatprep.subr.mxu0 0.0
  %100 = vmatpush2.msra.mxu0 0.0
  %101 = vmatprep.mubr.f32.mxu0 0.0
  %102 = vmatmul.mubr.f32.gmra.mxu0 %v31
  %v103 = vpop.f32.mrf.mxu0
  %v104 = vadd.f32 0.0, %v103
  %v105 = vpop.f32.mrf.mxu0
  %106 = vdwg.mxu0
  %vm107 = vcmask 130048
  %v109 = vsel %vm107, %v23, 0
  %111 = vmatprep.subr.mxu0 0.0
  %112 = vmatpush1.msra.mxu0 0.0
  %113 = vmatprep.subr.mxu0 0.0
  %114 = vmatpush1.msra.mxu0 0.0
  %115 = vmatprep.subr.mxu0 0.0
  %116 = vmatpush1.msra.mxu0 0.0
  %117 = vmatprep.subr.mxu0 0.0
  %118 = vmatpush1.msra.mxu0 0.0
  %119 = vmatprep.subr.mxu0 0.0
  %120 = vmatpush1.msra.mxu0 0.0
  %121 = vmatprep.subr.mxu0 0.0
  %122 = vmatpush1.msra.mxu0 0.0
  %123 = vmatprep.subr.mxu0 0.0
  %124 = vmatpush1.msra.mxu0 0.0
  %125 = vmatprep.subr.mxu0 0.0
  %126 = vmatpush1.msra.mxu0 0.0
  %127 = vmatprep.subr.mxu0 0.0
  %128 = vmatpush1.msra.mxu0 0.0
  %129 = vmatprep.subr.mxu0 0.0
  %130 = vmatpush1.msra.mxu0 0.0
  %131 = vmatprep.subr.mxu0 0.0
  %132 = vmatpush1.msra.mxu0 0.0
  %133 = vmatprep.subr.mxu0 0.0
  %134 = vmatpush1.msra.mxu0 0.0
  %135 = vmatprep.subr.mxu0 0.0
  %136 = vmatpush1.msra.mxu0 0.0
  %137 = vmatprep.subr.mxu0 0.0
  %138 = vmatpush1.msra.mxu0 0.0
  %139 = vmatprep.subr.mxu0 0.0
  %140 = vmatpush1.msra.mxu0 %v25
  %141 = vmatprep.subr.mxu0 0.0
  %142 = vmatpush1.msra.mxu0 %v24
  %143 = vmatprep.subr.mxu0 0.0
  %144 = vmatpush2.msra.mxu0 0.0
  %145 = vmatprep.subr.mxu0 0.0
  %146 = vmatpush2.msra.mxu0 0.0
  %147 = vmatprep.subr.mxu0 0.0
  %148 = vmatpush2.msra.mxu0 0.0
  %149 = vmatprep.subr.mxu0 0.0
  %150 = vmatpush2.msra.mxu0 0.0
  %151 = vmatprep.subr.mxu0 0.0
  %152 = vmatpush2.msra.mxu0 0.0
  %153 = vmatprep.subr.mxu0 0.0
  %154 = vmatpush2.msra.mxu0 0.0
  %155 = vmatprep.subr.mxu0 0.0
  %156 = vmatpush2.msra.mxu0 0.0
  %157 = vmatprep.subr.mxu0 0.0
  %158 = vmatpush2.msra.mxu0 0.0
  %159 = vmatprep.subr.mxu0 0.0
  %160 = vmatpush2.msra.mxu0 0.0
  %161 = vmatprep.subr.mxu0 0.0
  %162 = vmatpush2.msra.mxu0 0.0
  %163 = vmatprep.subr.mxu0 0.0
  %164 = vmatpush2.msra.mxu0 0.0
  %165 = vmatprep.subr.mxu0 0.0
  %166 = vmatpush2.msra.mxu0 0.0
  %167 = vmatprep.subr.mxu0 0.0
  %168 = vmatpush2.msra.mxu0 0.0
  %169 = vmatprep.subr.mxu0 0.0
  %170 = vmatpush2.msra.mxu0 0.0
  %171 = vmatprep.subr.mxu0 0.0
  %172 = vmatpush2.msra.mxu0 0.0
  %173 = vmatprep.subr.mxu0 0.0
  %174 = vmatpush2.msra.mxu0 0.0
  %175 = vmatprep.mubr.f32.mxu0 0.0
  %176 = vmatmul.mubr.f32.gmra.mxu0 %v109
  %v177 = vpop.f32.mrf.mxu0
  %v178 = vadd.f32 %v104, %v177
  %v179 = vpop.f32.mrf.mxu0
  %180 = vdwg.mxu0
  %v181 = vld [vmem:[%s4] sm:$0xff]
  %v182 = vld [vmem:[%s5] sm:$0x1]
  %v184 = vlaneseq
  %v185 = vshrl.u32 %v184, 7
  %v186 = vsub.s32 0, %v185
  %v187 = vrot.slane %v182, %v186
  %vm189 = vcmask 64512
  %v191 = vsel %vm189, %v178, 0
  %193 = vmatprep.subr.mxu0 0.0
  %194 = vmatpush1.msra.mxu0 0.0
  %195 = vmatprep.subr.mxu0 0.0
  %196 = vmatpush1.msra.mxu0 0.0
  %197 = vmatprep.subr.mxu0 0.0
  %198 = vmatpush1.msra.mxu0 0.0
  %199 = vmatprep.subr.mxu0 0.0
  %200 = vmatpush1.msra.mxu0 0.0
  %201 = vmatprep.subr.mxu0 0.0
  %202 = vmatpush1.msra.mxu0 0.0
  %203 = vmatprep.subr.mxu0 0.0
  %204 = vmatpush1.msra.mxu0 0.0
  %205 = vmatprep.subr.mxu0 0.0
  %206 = vmatpush1.msra.mxu0 0.0
  %207 = vmatprep.subr.mxu0 0.0
  %208 = vmatpush1.msra.mxu0 0.0
  %209 = vmatprep.subr.mxu0 0.0
  %210 = vmatpush1.msra.mxu0 0.0
  %211 = vmatprep.subr.mxu0 0.0
  %212 = vmatpush1.msra.mxu0 0.0
  %213 = vmatprep.subr.mxu0 0.0
  %214 = vmatpush1.msra.mxu0 0.0
  %215 = vmatprep.subr.mxu0 0.0
  %216 = vmatpush1.msra.mxu0 0.0
  %217 = vmatprep.subr.mxu0 0.0
  %218 = vmatpush1.msra.mxu0 0.0
  %219 = vmatprep.subr.mxu0 0.0
  %220 = vmatpush1.msra.mxu0 0.0
  %221 = vmatprep.subr.mxu0 0.0
  %222 = vmatpush1.msra.mxu0 0.0
  %223 = vmatprep.subr.mxu0 0.0
  %224 = vmatpush1.msra.mxu0 %v181
  %225 = vmatprep.subr.mxu0 0.0
  %226 = vmatpush2.msra.mxu0 0.0
  %227 = vmatprep.subr.mxu0 0.0
  %228 = vmatpush2.msra.mxu0 0.0
  %229 = vmatprep.subr.mxu0 0.0
  %230 = vmatpush2.msra.mxu0 0.0
  %231 = vmatprep.subr.mxu0 0.0
  %232 = vmatpush2.msra.mxu0 0.0
  %233 = vmatprep.subr.mxu0 0.0
  %234 = vmatpush2.msra.mxu0 0.0
  %235 = vmatprep.subr.mxu0 0.0
  %236 = vmatpush2.msra.mxu0 0.0
  %237 = vmatprep.subr.mxu0 0.0
  %238 = vmatpush2.msra.mxu0 0.0
  %239 = vmatprep.subr.mxu0 0.0
  %240 = vmatpush2.msra.mxu0 0.0
  %241 = vmatprep.subr.mxu0 0.0
  %242 = vmatpush2.msra.mxu0 0.0
  %243 = vmatprep.subr.mxu0 0.0
  %244 = vmatpush2.msra.mxu0 0.0
  %245 = vmatprep.subr.mxu0 0.0
  %246 = vmatpush2.msra.mxu0 0.0
  %247 = vmatprep.subr.mxu0 0.0
  %248 = vmatpush2.msra.mxu0 0.0
  %249 = vmatprep.subr.mxu0 0.0
  %250 = vmatpush2.msra.mxu0 0.0
  %251 = vmatprep.subr.mxu0 0.0
  %252 = vmatpush2.msra.mxu0 0.0
  %253 = vmatprep.subr.mxu0 0.0
  %254 = vmatpush2.msra.mxu0 0.0
  %255 = vmatprep.subr.mxu0 0.0
  %256 = vmatpush2.msra.mxu0 0.0
  %257 = vmatprep.mubr.f32.mxu0 0.0
  %258 = vmatmul.mubr.f32.gmra.mxu0 %v191
  %v259 = vpop.f32.mrf.mxu0
  %v260 = vadd.f32 %v187, %v259
  %v261 = vpop.f32.mrf.mxu0
  %262 = vdwg.mxu0
  %vm263 = vcmask 23552
  %264 = vst.msk [vmem:[%s6] sm:$0xff] %vm263, %v260
  %v265 = vld [vmem:[%s2] sm:$0xff]
  %s266 = scalar_lea.vmem %s0, 16
  %v267 = vld [vmem:[%s266] sm:$0xff]
  %v268 = vld [vmem:[%s266 + $0x8] sm:$0xff]
  %v269 = vld [vmem:[%s3] sm:$0xff]
  %s270 = scalar_lea.vmem %s1, 16
  %v271 = vld [vmem:[%s270] sm:$0xff]
  %v272 = vld [vmem:[%s270 + $0x8] sm:$0xf]
  %v274 = vsel %vm29, %v269, 0
  %v277 = vsel %vm33, %v272, 0
  %279 = vmatprep.subr.mxu0 0.0
  %280 = vmatpush1.msra.mxu0 0.0
  %281 = vmatprep.subr.mxu0 0.0
  %282 = vmatpush1.msra.mxu0 0.0
  %283 = vmatprep.subr.mxu0 0.0
  %284 = vmatpush1.msra.mxu0 0.0
  %285 = vmatprep.subr.mxu0 0.0
  %286 = vmatpush1.msra.mxu0 0.0
  %287 = vmatprep.subr.mxu0 0.0
  %288 = vmatpush1.msra.mxu0 0.0
  %289 = vmatprep.subr.mxu0 0.0
  %290 = vmatpush1.msra.mxu0 0.0
  %291 = vmatprep.subr.mxu0 0.0
  %292 = vmatpush1.msra.mxu0 0.0
  %293 = vmatprep.subr.mxu0 0.0
  %294 = vmatpush1.msra.mxu0 0.0
  %295 = vmatprep.subr.mxu0 0.0
  %296 = vmatpush1.msra.mxu0 0.0
  %297 = vmatprep.subr.mxu0 0.0
  %298 = vmatpush1.msra.mxu0 0.0
  %299 = vmatprep.subr.mxu0 0.0
  %300 = vmatpush1.msra.mxu0 0.0
  %301 = vmatprep.subr.mxu0 0.0
  %302 = vmatpush1.msra.mxu0 0.0
  %303 = vmatprep.subr.mxu0 0.0
  %304 = vmatpush1.msra.mxu0 0.0
  %305 = vmatprep.subr.mxu0 0.0
  %306 = vmatpush1.msra.mxu0 0.0
  %307 = vmatprep.subr.mxu0 0.0
  %308 = vmatpush1.msra.mxu0 %v277
  %309 = vmatprep.subr.mxu0 0.0
  %310 = vmatpush1.msra.mxu0 %v271
  %311 = vmatprep.subr.mxu0 0.0
  %312 = vmatpush2.msra.mxu0 0.0
  %313 = vmatprep.subr.mxu0 0.0
  %314 = vmatpush2.msra.mxu0 0.0
  %315 = vmatprep.subr.mxu0 0.0
  %316 = vmatpush2.msra.mxu0 0.0
  %317 = vmatprep.subr.mxu0 0.0
  %318 = vmatpush2.msra.mxu0 0.0
  %319 = vmatprep.subr.mxu0 0.0
  %320 = vmatpush2.msra.mxu0 0.0
  %321 = vmatprep.subr.mxu0 0.0
  %322 = vmatpush2.msra.mxu0 0.0
  %323 = vmatprep.subr.mxu0 0.0
  %324 = vmatpush2.msra.mxu0 0.0
  %325 = vmatprep.subr.mxu0 0.0
  %326 = vmatpush2.msra.mxu0 0.0
  %327 = vmatprep.subr.mxu0 0.0
  %328 = vmatpush2.msra.mxu0 0.0
  %329 = vmatprep.subr.mxu0 0.0
  %330 = vmatpush2.msra.mxu0 0.0
  %331 = vmatprep.subr.mxu0 0.0
  %332 = vmatpush2.msra.mxu0 0.0
  %333 = vmatprep.subr.mxu0 0.0
  %334 = vmatpush2.msra.mxu0 0.0
  %335 = vmatprep.subr.mxu0 0.0
  %336 = vmatpush2.msra.mxu0 0.0
  %337 = vmatprep.subr.mxu0 0.0
  %338 = vmatpush2.msra.mxu0 0.0
  %339 = vmatprep.subr.mxu0 0.0
  %340 = vmatpush2.msra.mxu0 0.0
  %341 = vmatprep.subr.mxu0 0.0
  %342 = vmatpush2.msra.mxu0 0.0
  %343 = vmatprep.mubr.f32.mxu0 0.0
  %344 = vmatmul.mubr.f32.gmra.mxu0 %v274
  %v345 = vpop.f32.mrf.mxu0
  %v346 = vadd.f32 0.0, %v345
  %v347 = vpop.f32.mrf.mxu0
  %348 = vdwg.mxu0
  %v350 = vsel %vm107, %v265, 0
  %352 = vmatprep.subr.mxu0 0.0
  %353 = vmatpush1.msra.mxu0 0.0
  %354 = vmatprep.subr.mxu0 0.0
  %355 = vmatpush1.msra.mxu0 0.0
  %356 = vmatprep.subr.mxu0 0.0
  %357 = vmatpush1.msra.mxu0 0.0
  %358 = vmatprep.subr.mxu0 0.0
  %359 = vmatpush1.msra.mxu0 0.0
  %360 = vmatprep.subr.mxu0 0.0
  %361 = vmatpush1.msra.mxu0 0.0
  %362 = vmatprep.subr.mxu0 0.0
  %363 = vmatpush1.msra.mxu0 0.0
  %364 = vmatprep.subr.mxu0 0.0
  %365 = vmatpush1.msra.mxu0 0.0
  %366 = vmatprep.subr.mxu0 0.0
  %367 = vmatpush1.msra.mxu0 0.0
  %368 = vmatprep.subr.mxu0 0.0
  %369 = vmatpush1.msra.mxu0 0.0
  %370 = vmatprep.subr.mxu0 0.0
  %371 = vmatpush1.msra.mxu0 0.0
  %372 = vmatprep.subr.mxu0 0.0
  %373 = vmatpush1.msra.mxu0 0.0
  %374 = vmatprep.subr.mxu0 0.0
  %375 = vmatpush1.msra.mxu0 0.0
  %376 = vmatprep.subr.mxu0 0.0
  %377 = vmatpush1.msra.mxu0 0.0
  %378 = vmatprep.subr.mxu0 0.0
  %379 = vmatpush1.msra.mxu0 0.0
  %380 = vmatprep.subr.mxu0 0.0
  %381 = vmatpush1.msra.mxu0 %v268
  %382 = vmatprep.subr.mxu0 0.0
  %383 = vmatpush1.msra.mxu0 %v267
  %384 = vmatprep.subr.mxu0 0.0
  %385 = vmatpush2.msra.mxu0 0.0
  %386 = vmatprep.subr.mxu0 0.0
  %387 = vmatpush2.msra.mxu0 0.0
  %388 = vmatprep.subr.mxu0 0.0
  %389 = vmatpush2.msra.mxu0 0.0
  %390 = vmatprep.subr.mxu0 0.0
  %391 = vmatpush2.msra.mxu0 0.0
  %392 = vmatprep.subr.mxu0 0.0
  %393 = vmatpush2.msra.mxu0 0.0
  %394 = vmatprep.subr.mxu0 0.0
  %395 = vmatpush2.msra.mxu0 0.0
  %396 = vmatprep.subr.mxu0 0.0
  %397 = vmatpush2.msra.mxu0 0.0
  %398 = vmatprep.subr.mxu0 0.0
  %399 = vmatpush2.msra.mxu0 0.0
  %400 = vmatprep.subr.mxu0 0.0
  %401 = vmatpush2.msra.mxu0 0.0
  %402 = vmatprep.subr.mxu0 0.0
  %403 = vmatpush2.msra.mxu0 0.0
  %404 = vmatprep.subr.mxu0 0.0
  %405 = vmatpush2.msra.mxu0 0.0
  %406 = vmatprep.subr.mxu0 0.0
  %407 = vmatpush2.msra.mxu0 0.0
  %408 = vmatprep.subr.mxu0 0.0
  %409 = vmatpush2.msra.mxu0 0.0
  %410 = vmatprep.subr.mxu0 0.0
  %411 = vmatpush2.msra.mxu0 0.0
  %412 = vmatprep.subr.mxu0 0.0
  %413 = vmatpush2.msra.mxu0 0.0
  %414 = vmatprep.subr.mxu0 0.0
  %415 = vmatpush2.msra.mxu0 0.0
  %416 = vmatprep.mubr.f32.mxu0 0.0
  %417 = vmatmul.mubr.f32.gmra.mxu0 %v350
  %v418 = vpop.f32.mrf.mxu0
  %v419 = vadd.f32 %v346, %v418
  %v420 = vpop.f32.mrf.mxu0
  %421 = vdwg.mxu0
  %v422 = vld [vmem:[%s4] sm:$0xff]
  %v423 = vld [vmem:[%s5] sm:$0x1]
  %v425 = vlaneseq
  %v426 = vshrl.u32 %v425, 7
  %v427 = vsub.s32 0, %v426
  %v428 = vrot.slane %v423, %v427
  %v431 = vsel %vm189, %v419, 0
  %433 = vmatprep.subr.mxu0 0.0
  %434 = vmatpush1.msra.mxu0 0.0
  %435 = vmatprep.subr.mxu0 0.0
  %436 = vmatpush1.msra.mxu0 0.0
  %437 = vmatprep.subr.mxu0 0.0
  %438 = vmatpush1.msra.mxu0 0.0
  %439 = vmatprep.subr.mxu0 0.0
  %440 = vmatpush1.msra.mxu0 0.0
  %441 = vmatprep.subr.mxu0 0.0
  %442 = vmatpush1.msra.mxu0 0.0
  %443 = vmatprep.subr.mxu0 0.0
  %444 = vmatpush1.msra.mxu0 0.0
  %445 = vmatprep.subr.mxu0 0.0
  %446 = vmatpush1.msra.mxu0 0.0
  %447 = vmatprep.subr.mxu0 0.0
  %448 = vmatpush1.msra.mxu0 0.0
  %449 = vmatprep.subr.mxu0 0.0
  %450 = vmatpush1.msra.mxu0 0.0
  %451 = vmatprep.subr.mxu0 0.0
  %452 = vmatpush1.msra.mxu0 0.0
  %453 = vmatprep.subr.mxu0 0.0
  %454 = vmatpush1.msra.mxu0 0.0
  %455 = vmatprep.subr.mxu0 0.0
  %456 = vmatpush1.msra.mxu0 0.0
  %457 = vmatprep.subr.mxu0 0.0
  %458 = vmatpush1.msra.mxu0 0.0
  %459 = vmatprep.subr.mxu0 0.0
  %460 = vmatpush1.msra.mxu0 0.0
  %461 = vmatprep.subr.mxu0 0.0
  %462 = vmatpush1.msra.mxu0 0.0
  %463 = vmatprep.subr.mxu0 0.0
  %464 = vmatpush1.msra.mxu0 %v422
  %465 = vmatprep.subr.mxu0 0.0
  %466 = vmatpush2.msra.mxu0 0.0
  %467 = vmatprep.subr.mxu0 0.0
  %468 = vmatpush2.msra.mxu0 0.0
  %469 = vmatprep.subr.mxu0 0.0
  %470 = vmatpush2.msra.mxu0 0.0
  %471 = vmatprep.subr.mxu0 0.0
  %472 = vmatpush2.msra.mxu0 0.0
  %473 = vmatprep.subr.mxu0 0.0
  %474 = vmatpush2.msra.mxu0 0.0
  %475 = vmatprep.subr.mxu0 0.0
  %476 = vmatpush2.msra.mxu0 0.0
  %477 = vmatprep.subr.mxu0 0.0
  %478 = vmatpush2.msra.mxu0 0.0
  %479 = vmatprep.subr.mxu0 0.0
  %480 = vmatpush2.msra.mxu0 0.0
  %481 = vmatprep.subr.mxu0 0.0
  %482 = vmatpush2.msra.mxu0 0.0
  %483 = vmatprep.subr.mxu0 0.0
  %484 = vmatpush2.msra.mxu0 0.0
  %485 = vmatprep.subr.mxu0 0.0
  %486 = vmatpush2.msra.mxu0 0.0
  %487 = vmatprep.subr.mxu0 0.0
  %488 = vmatpush2.msra.mxu0 0.0
  %489 = vmatprep.subr.mxu0 0.0
  %490 = vmatpush2.msra.mxu0 0.0
  %491 = vmatprep.subr.mxu0 0.0
  %492 = vmatpush2.msra.mxu0 0.0
  %493 = vmatprep.subr.mxu0 0.0
  %494 = vmatpush2.msra.mxu0 0.0
  %495 = vmatprep.subr.mxu0 0.0
  %496 = vmatpush2.msra.mxu0 0.0
  %497 = vmatprep.mubr.f32.mxu0 0.0
  %498 = vmatmul.mubr.f32.gmra.mxu0 %v431
  %v499 = vpop.f32.mrf.mxu0
  %v500 = vadd.f32 %v428, %v499
  %v501 = vpop.f32.mrf.mxu0
  %502 = vdwg.mxu0
  %s503 = scalar_lea.vmem %s6, 8
  %504 = vst.msk [vmem:[%s503] sm:$0xff] %vm263, %v500
  // Predicated region
  $region26: #{tpu_custom_call.1} parent=0 // pred_check
    _
  $region27: #{tpu_custom_call.1} parent=0 // pred_check_branch
    %506 = sbr.rel (0) target = $region29
  $region28: #{tpu_custom_call.1} parent=0 // pred_region
    _
  $region29: #{tpu_custom_call.1} parent=0 // pred_fallthru
    _
  // Predicated region
  $region30: #{tpu_custom_call.1} parent=0 // pred_check
    _
  $region31: #{tpu_custom_call.1} parent=0 // pred_check_branch
    %508 = sbr.rel (0) target = $region33
  $region32: #{tpu_custom_call.1} parent=0 // pred_region
    _
  $region33: #{tpu_custom_call.1} parent=0 // pred_fallthru
    _

</llo_original>
